<compile_context>
chip_gen: v7x
topology: tpu7x:2x2x1
jax: 0.10.0
libtpu: 0.0.40
codegen_flags: <defaults>
</compile_context>

<pallas_src>
import jax
import jax.numpy as jnp
from jax.experimental import pallas as pl
from jax.experimental.pallas import tpu as pltpu


def _round_up(x, m):
    return ((x + m - 1) // m) * m


def _mlp_kernel(x_ref, w1t_ref, b1_ref, w2t_ref, b2_ref, w3t_ref, b3_ref,
                w4t_ref, b4_ref, o_ref):
    # Batch-on-lanes layout: every tensor in here is (features, batch_tile).
    x = x_ref[...]                      # (state_dim, TB)
    w1t = w1t_ref[...]                  # (128, state_dim)

    # Layer 1: K = state_dim = 4 would leave the MXU ~97% empty -> do it as
    # state_dim outer-product FMAs on the VPU.
    h1 = b1_ref[...] + w1t[:, 0:1] * x[0:1, :]
    for k in range(1, x.shape[0]):
        h1 = h1 + w1t[:, k:k + 1] * x[k:k + 1, :]
    h1 = jnp.maximum(h1, 0.0)           # (128, TB)

    # Layer 2: (32,128) @ (128,TB) -> MXU with full output lanes (N = TB).
    h2 = jnp.maximum(
        jnp.dot(w2t_ref[...], h1, preferred_element_type=jnp.float32)
        + b2_ref[...], 0.0)             # (32, TB)

    # Layer 3: (8,32) @ (32,TB) -> MXU (single push, MXU otherwise idle).
    h3 = jnp.maximum(
        jnp.dot(w3t_ref[...], h2, preferred_element_type=jnp.float32)
        + b3_ref[...], 0.0)             # (8, TB)

    # Layer 4: 8 broadcast FMAs accumulating into the lane-dense output rows.
    w4t = w4t_ref[...]                  # (action_dim, 8)
    acc = b4_ref[...] + w4t[:, 0:1] * h3[0:1, :]
    for k in range(1, h3.shape[0]):
        acc = acc + w4t[:, k:k + 1] * h3[k:k + 1, :]
    o_ref[...] = acc.astype(o_ref.dtype)   # (action_dim, TB)


def _choose_tiling(B):
    """Pick (TB, grid_steps) for the batch dimension from a VMEM budget."""
    Bp = _round_up(max(B, 1), 128)
    # f32 bytes per batch column resident in VMEM at once:
    #   2x double-buffered x tile (sublane-padded to 8) + 2x out tile (8)
    #   + h1 (128) + h2 (32) + h3 (8) rows.
    bytes_per_col = (2 * 8 + 2 * 8 + 128 + 32 + 8) * 4
    budget = 24 * 1024 * 1024           # conservative; headroom on all gens
    tb_max = max(128, min(8192, (budget // bytes_per_col) // 128 * 128))
    steps = pl.cdiv(Bp, tb_max)
    if Bp >= 4 * 128:
        # Keep >= 4 grid steps when possible so v7x's two TensorCores both
        # get work (no effect on single-core v5e/v6e).
        steps = max(steps, min(4, Bp // 128))
    tb = _round_up(pl.cdiv(Bp, steps), 128)
    return tb, pl.cdiv(Bp, tb)


def mydqn_forward(x, w1, b1, w2, b2, w3, b3, w4, b4):
    """x: (B, state_dim); weights stored (in_features, out_features), biases (1, out)."""
    B, state_dim = x.shape
    hidden1 = w1.shape[1]
    action_dim = w4.shape[1]

    TB, grid = _choose_tiling(B)
    Bp = TB * grid

    # Batch-on-lanes: features on sublanes, batch on lanes.
    x_t = jnp.pad(x.T, ((0, 0), (0, Bp - B)))           # (state_dim, Bp)
    w1t, w2t, w3t, w4t = w1.T, w2.T, w3.T, w4.T          # (out, in)
    b1c, b2c, b3c, b4c = (b.reshape(-1, 1) for b in (b1, b2, b3, b4))

    def _const_spec(shape):
        return pl.BlockSpec(shape, lambda i: (0, 0))

    weight_bytes = sum(int(a.size) * 4
                       for a in (w1, b1, w2, b2, w3, b3, w4, b4))
    flops_per_col = 2 * (state_dim * hidden1 + hidden1 * w2.shape[1]
                         + w2.shape[1] * w3.shape[1]
                         + w3.shape[1] * action_dim)

    out = pl.pallas_call(
        _mlp_kernel,
        out_shape=jax.ShapeDtypeStruct((action_dim, Bp), jnp.float32),
        grid=(grid,),
        in_specs=[
            pl.BlockSpec((state_dim, TB), lambda i: (0, i)),   # streamed x tile
            _const_spec(w1t.shape), _const_spec(b1c.shape),
            _const_spec(w2t.shape), _const_spec(b2c.shape),
            _const_spec(w3t.shape), _const_spec(b3c.shape),
            _const_spec(w4t.shape), _const_spec(b4c.shape),
        ],
        out_specs=pl.BlockSpec((action_dim, TB), lambda i: (0, i)),
        compiler_params=pltpu.CompilerParams(
            dimension_semantics=("parallel",),
            vmem_limit_bytes=32 * 1024 * 1024),
        cost_estimate=pl.CostEstimate(
            flops=Bp * flops_per_col,
            transcendentals=0,
            bytes_accessed=Bp * (state_dim + action_dim) * 4 + weight_bytes),
    )(x_t, w1t, b1c, w2t, b2c, w3t, b3c, w4t, b4c)

    # Padded batch columns (ReLU of biases) are sliced away here; do not
    # reduce over the padded region inside the kernel.
    return out[:, :B].T                                   # (B, action_dim)


mydqn_forward_jit = jax.jit(mydqn_forward)


def init_params(key, state_dim=4, action_dim=1):
    """Deterministic init mimicking PyTorch's default U(-1/sqrt(fan_in), 1/sqrt(fan_in))."""
    dims = [(state_dim, 128), (128, 32), (32, 8), (8, action_dim)]
    params = []
    for fan_in, fan_out in dims:
        key, kw, kb = jax.random.split(key, 3)
        bound = 1.0 / (fan_in ** 0.5)
        w = jax.random.uniform(kw, (fan_in, fan_out), jnp.float32, -bound, bound)
        b = jax.random.uniform(kb, (1, fan_out), jnp.float32, -bound, bound)
        params.extend([w, b])
    return params


def _ref_forward(x, w1, b1, w2, b2, w3, b3, w4, b4):
    h1 = jnp.maximum(x @ w1 + b1, 0.0)
    h2 = jnp.maximum(h1 @ w2 + b2, 0.0)
    h3 = jnp.maximum(h2 @ w3 + b3, 0.0)
    return h3 @ w4 + b4


# TODO(synk): predict()/add_memory()/train_dqn() (replay buffer, MSE loss,
# Adam updates) are host-side training utilities with no single-kernel Pallas
# equivalent; only the forward pass is implemented here.

if __name__ == "__main__":
    key = jax.random.PRNGKey(0)
    key, kx = jax.random.split(key)

    batch, state_dim, action_dim = 8, 4, 1
    x = jax.random.normal(kx, (batch, state_dim), dtype=jnp.float32)
    params = init_params(key, state_dim=state_dim, action_dim=action_dim)

    out = jax.block_until_ready(mydqn_forward_jit(x, *params))
    ref = _ref_forward(x, *params)
    assert out.shape == (batch, action_dim)
    assert jnp.allclose(out, ref, atol=1e-5, rtol=1e-5)

    # Batch that is not a multiple of the 128-lane tile.
    key, kx2 = jax.random.split(key)
    x2 = jax.random.normal(kx2, (13, state_dim), dtype=jnp.float32)
    out2 = jax.block_until_ready(mydqn_forward_jit(x2, *params))
    ref2 = _ref_forward(x2, *params)
    assert out2.shape == (13, action_dim)
    assert jnp.allclose(out2, ref2, atol=1e-5, rtol=1e-5)

    # Batch large enough to exercise a multi-step grid (ragged last tile).
    key, kx3 = jax.random.split(key)
    x3 = jax.random.normal(kx3, (600, state_dim), dtype=jnp.float32)
    out3 = jax.block_until_ready(mydqn_forward_jit(x3, *params))
    ref3 = _ref_forward(x3, *params)
    assert out3.shape == (600, action_dim)
    assert jnp.allclose(out3, ref3, atol=1e-4, rtol=1e-4)

    print("KERNEL_OK")
</pallas_src>

<mosaic_0001>
module attributes {stable_mosaic.version = 11 : i64} {
  func.func @_mlp_kernel(%arg0: i32, %arg1: memref<4x128xf32, #tpu.memory_space<vmem>>, %arg2: memref<128x4xf32, #tpu.memory_space<vmem>>, %arg3: memref<128x1xf32, #tpu.memory_space<vmem>>, %arg4: memref<32x128xf32, #tpu.memory_space<vmem>>, %arg5: memref<32x1xf32, #tpu.memory_space<vmem>>, %arg6: memref<8x32xf32, #tpu.memory_space<vmem>>, %arg7: memref<8x1xf32, #tpu.memory_space<vmem>>, %arg8: memref<1x8xf32, #tpu.memory_space<vmem>>, %arg9: memref<1x1xf32, #tpu.memory_space<vmem>>, %arg10: memref<1x128xf32, #tpu.memory_space<vmem>>) attributes {dimension_semantics = [#tpu.dimension_semantics<parallel>], iteration_bounds = array<i64: 1>, scalar_prefetch = 0 : i64, scratch_operands = 0 : i64, tpu.core_type = #tpu.core_type<tc>, window_params = [{transform_indices = @transform_0, window_bounds = array<i64: 4, 128>}, {pipeline_mode = #tpu.pipeline_mode<synchronous>, transform_indices = @transform_1, window_bounds = array<i64: 128, 4>}, {pipeline_mode = #tpu.pipeline_mode<synchronous>, transform_indices = @transform_2, window_bounds = array<i64: 128, 1>}, {pipeline_mode = #tpu.pipeline_mode<synchronous>, transform_indices = @transform_3, window_bounds = array<i64: 32, 128>}, {pipeline_mode = #tpu.pipeline_mode<synchronous>, transform_indices = @transform_4, window_bounds = array<i64: 32, 1>}, {pipeline_mode = #tpu.pipeline_mode<synchronous>, transform_indices = @transform_5, window_bounds = array<i64: 8, 32>}, {pipeline_mode = #tpu.pipeline_mode<synchronous>, transform_indices = @transform_6, window_bounds = array<i64: 8, 1>}, {pipeline_mode = #tpu.pipeline_mode<synchronous>, transform_indices = @transform_7, window_bounds = array<i64: 1, 8>}, {pipeline_mode = #tpu.pipeline_mode<synchronous>, transform_indices = @transform_8, window_bounds = array<i64: 1, 1>}, {transform_indices = @transform_9, window_bounds = array<i64: 1, 128>}]} {
    %c0 = arith.constant 0 : index
    %c0_0 = arith.constant 0 : index
    %0 = vector.load %arg1[%c0, %c0_0] : memref<4x128xf32, #tpu.memory_space<vmem>>, vector<4x128xf32>
    %c0_1 = arith.constant 0 : index
    %c0_2 = arith.constant 0 : index
    %1 = vector.load %arg2[%c0_1, %c0_2] : memref<128x4xf32, #tpu.memory_space<vmem>>, vector<128x4xf32>
    %c0_3 = arith.constant 0 : index
    %c0_4 = arith.constant 0 : index
    %2 = vector.load %arg3[%c0_3, %c0_4] : memref<128x1xf32, #tpu.memory_space<vmem>>, vector<128x1xf32>
    %3 = vector.extract_strided_slice %1 {offsets = [0, 0], sizes = [128, 1], strides = [1, 1]} : vector<128x4xf32> to vector<128x1xf32>
    %4 = vector.extract_strided_slice %0 {offsets = [0, 0], sizes = [1, 128], strides = [1, 1]} : vector<4x128xf32> to vector<1x128xf32>
    %5 = vector.broadcast %3 : vector<128x1xf32> to vector<128x128xf32>
    %6 = vector.broadcast %4 : vector<1x128xf32> to vector<128x128xf32>
    %7 = arith.mulf %5, %6 : vector<128x128xf32>
    %8 = vector.broadcast %2 : vector<128x1xf32> to vector<128x128xf32>
    %9 = arith.addf %8, %7 : vector<128x128xf32>
    %10 = vector.extract_strided_slice %1 {offsets = [0, 1], sizes = [128, 1], strides = [1, 1]} : vector<128x4xf32> to vector<128x1xf32>
    %11 = vector.extract_strided_slice %0 {offsets = [1, 0], sizes = [1, 128], strides = [1, 1]} : vector<4x128xf32> to vector<1x128xf32>
    %12 = vector.broadcast %10 : vector<128x1xf32> to vector<128x128xf32>
    %13 = vector.broadcast %11 : vector<1x128xf32> to vector<128x128xf32>
    %14 = arith.mulf %12, %13 : vector<128x128xf32>
    %15 = arith.addf %9, %14 : vector<128x128xf32>
    %16 = vector.extract_strided_slice %1 {offsets = [0, 2], sizes = [128, 1], strides = [1, 1]} : vector<128x4xf32> to vector<128x1xf32>
    %17 = vector.extract_strided_slice %0 {offsets = [2, 0], sizes = [1, 128], strides = [1, 1]} : vector<4x128xf32> to vector<1x128xf32>
    %18 = vector.broadcast %16 : vector<128x1xf32> to vector<128x128xf32>
    %19 = vector.broadcast %17 : vector<1x128xf32> to vector<128x128xf32>
    %20 = arith.mulf %18, %19 : vector<128x128xf32>
    %21 = arith.addf %15, %20 : vector<128x128xf32>
    %22 = vector.extract_strided_slice %1 {offsets = [0, 3], sizes = [128, 1], strides = [1, 1]} : vector<128x4xf32> to vector<128x1xf32>
    %23 = vector.extract_strided_slice %0 {offsets = [3, 0], sizes = [1, 128], strides = [1, 1]} : vector<4x128xf32> to vector<1x128xf32>
    %24 = vector.broadcast %22 : vector<128x1xf32> to vector<128x128xf32>
    %25 = vector.broadcast %23 : vector<1x128xf32> to vector<128x128xf32>
    %26 = arith.mulf %24, %25 : vector<128x128xf32>
    %27 = arith.addf %21, %26 : vector<128x128xf32>
    %cst = arith.constant 0.000000e+00 : f32
    %28 = vector.broadcast %cst : f32 to vector<128x128xf32>
    %29 = arith.maximumf %27, %28 : vector<128x128xf32>
    %c0_5 = arith.constant 0 : index
    %c0_6 = arith.constant 0 : index
    %30 = vector.load %arg4[%c0_5, %c0_6] : memref<32x128xf32, #tpu.memory_space<vmem>>, vector<32x128xf32>
    %cst_7 = arith.constant dense<0.000000e+00> : vector<32x128xf32>
    %31 = tpu.matmul %30, %29, %cst_7 {dimension_numbers = #tpu.dot_dimension_numbers<[1], [0], [0], [1], [0, 0, 1, 1], [], []>} : vector<32x128xf32>, vector<128x128xf32>, vector<32x128xf32> -> vector<32x128xf32>
    %c0_8 = arith.constant 0 : index
    %c0_9 = arith.constant 0 : index
    %32 = vector.load %arg5[%c0_8, %c0_9] : memref<32x1xf32, #tpu.memory_space<vmem>>, vector<32x1xf32>
    %33 = vector.broadcast %32 : vector<32x1xf32> to vector<32x128xf32>
    %34 = arith.addf %31, %33 : vector<32x128xf32>
    %cst_10 = arith.constant 0.000000e+00 : f32
    %35 = vector.broadcast %cst_10 : f32 to vector<32x128xf32>
    %36 = arith.maximumf %34, %35 : vector<32x128xf32>
    %c0_11 = arith.constant 0 : index
    %c0_12 = arith.constant 0 : index
    %37 = vector.load %arg6[%c0_11, %c0_12] : memref<8x32xf32, #tpu.memory_space<vmem>>, vector<8x32xf32>
    %cst_13 = arith.constant dense<0.000000e+00> : vector<8x128xf32>
    %38 = tpu.matmul %37, %36, %cst_13 {dimension_numbers = #tpu.dot_dimension_numbers<[1], [0], [0], [1], [0, 0, 1, 1], [], []>} : vector<8x32xf32>, vector<32x128xf32>, vector<8x128xf32> -> vector<8x128xf32>
    %c0_14 = arith.constant 0 : index
    %c0_15 = arith.constant 0 : index
    %39 = vector.load %arg7[%c0_14, %c0_15] : memref<8x1xf32, #tpu.memory_space<vmem>>, vector<8x1xf32>
    %40 = vector.broadcast %39 : vector<8x1xf32> to vector<8x128xf32>
    %41 = arith.addf %38, %40 : vector<8x128xf32>
    %cst_16 = arith.constant 0.000000e+00 : f32
    %42 = vector.broadcast %cst_16 : f32 to vector<8x128xf32>
    %43 = arith.maximumf %41, %42 : vector<8x128xf32>
    %c0_17 = arith.constant 0 : index
    %c0_18 = arith.constant 0 : index
    %44 = vector.load %arg8[%c0_17, %c0_18] : memref<1x8xf32, #tpu.memory_space<vmem>>, vector<1x8xf32>
    %c0_19 = arith.constant 0 : index
    %c0_20 = arith.constant 0 : index
    %45 = vector.load %arg9[%c0_19, %c0_20] : memref<1x1xf32, #tpu.memory_space<vmem>>, vector<1x1xf32>
    %46 = vector.extract_strided_slice %44 {offsets = [0, 0], sizes = [1, 1], strides = [1, 1]} : vector<1x8xf32> to vector<1x1xf32>
    %47 = vector.extract_strided_slice %43 {offsets = [0, 0], sizes = [1, 128], strides = [1, 1]} : vector<8x128xf32> to vector<1x128xf32>
    %48 = vector.broadcast %46 : vector<1x1xf32> to vector<1x128xf32>
    %49 = arith.mulf %48, %47 : vector<1x128xf32>
    %50 = vector.broadcast %45 : vector<1x1xf32> to vector<1x128xf32>
    %51 = arith.addf %50, %49 : vector<1x128xf32>
    %52 = vector.extract_strided_slice %44 {offsets = [0, 1], sizes = [1, 1], strides = [1, 1]} : vector<1x8xf32> to vector<1x1xf32>
    %53 = vector.extract_strided_slice %43 {offsets = [1, 0], sizes = [1, 128], strides = [1, 1]} : vector<8x128xf32> to vector<1x128xf32>
    %54 = vector.broadcast %52 : vector<1x1xf32> to vector<1x128xf32>
    %55 = arith.mulf %54, %53 : vector<1x128xf32>
    %56 = arith.addf %51, %55 : vector<1x128xf32>
    %57 = vector.extract_strided_slice %44 {offsets = [0, 2], sizes = [1, 1], strides = [1, 1]} : vector<1x8xf32> to vector<1x1xf32>
    %58 = vector.extract_strided_slice %43 {offsets = [2, 0], sizes = [1, 128], strides = [1, 1]} : vector<8x128xf32> to vector<1x128xf32>
    %59 = vector.broadcast %57 : vector<1x1xf32> to vector<1x128xf32>
    %60 = arith.mulf %59, %58 : vector<1x128xf32>
    %61 = arith.addf %56, %60 : vector<1x128xf32>
    %62 = vector.extract_strided_slice %44 {offsets = [0, 3], sizes = [1, 1], strides = [1, 1]} : vector<1x8xf32> to vector<1x1xf32>
    %63 = vector.extract_strided_slice %43 {offsets = [3, 0], sizes = [1, 128], strides = [1, 1]} : vector<8x128xf32> to vector<1x128xf32>
    %64 = vector.broadcast %62 : vector<1x1xf32> to vector<1x128xf32>
    %65 = arith.mulf %64, %63 : vector<1x128xf32>
    %66 = arith.addf %61, %65 : vector<1x128xf32>
    %67 = vector.extract_strided_slice %44 {offsets = [0, 4], sizes = [1, 1], strides = [1, 1]} : vector<1x8xf32> to vector<1x1xf32>
    %68 = vector.extract_strided_slice %43 {offsets = [4, 0], sizes = [1, 128], strides = [1, 1]} : vector<8x128xf32> to vector<1x128xf32>
    %69 = vector.broadcast %67 : vector<1x1xf32> to vector<1x128xf32>
    %70 = arith.mulf %69, %68 : vector<1x128xf32>
    %71 = arith.addf %66, %70 : vector<1x128xf32>
    %72 = vector.extract_strided_slice %44 {offsets = [0, 5], sizes = [1, 1], strides = [1, 1]} : vector<1x8xf32> to vector<1x1xf32>
    %73 = vector.extract_strided_slice %43 {offsets = [5, 0], sizes = [1, 128], strides = [1, 1]} : vector<8x128xf32> to vector<1x128xf32>
    %74 = vector.broadcast %72 : vector<1x1xf32> to vector<1x128xf32>
    %75 = arith.mulf %74, %73 : vector<1x128xf32>
    %76 = arith.addf %71, %75 : vector<1x128xf32>
    %77 = vector.extract_strided_slice %44 {offsets = [0, 6], sizes = [1, 1], strides = [1, 1]} : vector<1x8xf32> to vector<1x1xf32>
    %78 = vector.extract_strided_slice %43 {offsets = [6, 0], sizes = [1, 128], strides = [1, 1]} : vector<8x128xf32> to vector<1x128xf32>
    %79 = vector.broadcast %77 : vector<1x1xf32> to vector<1x128xf32>
    %80 = arith.mulf %79, %78 : vector<1x128xf32>
    %81 = arith.addf %76, %80 : vector<1x128xf32>
    %82 = vector.extract_strided_slice %44 {offsets = [0, 7], sizes = [1, 1], strides = [1, 1]} : vector<1x8xf32> to vector<1x1xf32>
    %83 = vector.extract_strided_slice %43 {offsets = [7, 0], sizes = [1, 128], strides = [1, 1]} : vector<8x128xf32> to vector<1x128xf32>
    %84 = vector.broadcast %82 : vector<1x1xf32> to vector<1x128xf32>
    %85 = arith.mulf %84, %83 : vector<1x128xf32>
    %86 = arith.addf %81, %85 : vector<1x128xf32>
    %c0_21 = arith.constant 0 : index
    %c0_22 = arith.constant 0 : index
    %87 = vector.load %arg10[%c0_21, %c0_22] : memref<1x128xf32, #tpu.memory_space<vmem>>, vector<1x128xf32>
    tpu.vector_store %arg10[%c0_21, %c0_22], %86 {strides = array<i32>} : memref<1x128xf32, #tpu.memory_space<vmem>>, vector<1x128xf32>,
    return
  }
  func.func @transform_0(%arg0: i32) -> (i32, i32) {
    %c0_i32 = arith.constant 0 : i32
    %c0_i32_0 = arith.constant 0 : i32
    return %c0_i32, %arg0 : i32, i32
  }
  func.func @transform_1(%arg0: i32) -> (i32, i32) {
    %c0_i32 = arith.constant 0 : i32
    %c0_i32_0 = arith.constant 0 : i32
    %c0_i32_1 = arith.constant 0 : i32
    return %c0_i32, %c0_i32_0 : i32, i32
  }
  func.func @transform_2(%arg0: i32) -> (i32, i32) {
    %c0_i32 = arith.constant 0 : i32
    %c0_i32_0 = arith.constant 0 : i32
    %c0_i32_1 = arith.constant 0 : i32
    return %c0_i32, %c0_i32_0 : i32, i32
  }
  func.func @transform_3(%arg0: i32) -> (i32, i32) {
    %c0_i32 = arith.constant 0 : i32
    %c0_i32_0 = arith.constant 0 : i32
    %c0_i32_1 = arith.constant 0 : i32
    return %c0_i32, %c0_i32_0 : i32, i32
  }
  func.func @transform_4(%arg0: i32) -> (i32, i32) {
    %c0_i32 = arith.constant 0 : i32
    %c0_i32_0 = arith.constant 0 : i32
    %c0_i32_1 = arith.constant 0 : i32
    return %c0_i32, %c0_i32_0 : i32, i32
  }
  func.func @transform_5(%arg0: i32) -> (i32, i32) {
    %c0_i32 = arith.constant 0 : i32
    %c0_i32_0 = arith.constant 0 : i32
    %c0_i32_1 = arith.constant 0 : i32
    return %c0_i32, %c0_i32_0 : i32, i32
  }
  func.func @transform_6(%arg0: i32) -> (i32, i32) {
    %c0_i32 = arith.constant 0 : i32
    %c0_i32_0 = arith.constant 0 : i32
    %c0_i32_1 = arith.constant 0 : i32
    return %c0_i32, %c0_i32_0 : i32, i32
  }
  func.func @transform_7(%arg0: i32) -> (i32, i32) {
    %c0_i32 = arith.constant 0 : i32
    %c0_i32_0 = arith.constant 0 : i32
    %c0_i32_1 = arith.constant 0 : i32
    return %c0_i32, %c0_i32_0 : i32, i32
  }
  func.func @transform_8(%arg0: i32) -> (i32, i32) {
    %c0_i32 = arith.constant 0 : i32
    %c0_i32_0 = arith.constant 0 : i32
    %c0_i32_1 = arith.constant 0 : i32
    return %c0_i32, %c0_i32_0 : i32, i32
  }
  func.func @transform_9(%arg0: i32) -> (i32, i32) {
    %c0_i32 = arith.constant 0 : i32
    %c0_i32_0 = arith.constant 0 : i32
    return %c0_i32, %arg0 : i32, i32
  }
}

</mosaic_0001>

<llo_original>
// kernel: mydqn_forward.1
$region0: #{mydqn_forward.1}
  #allocation0 [shape = 'u32[]', space=smem, size = 0x4, offset = 0x4, fixed_abs, tag = 'smem constant byte address 0x4 - core index']
  #allocation1 [shape = 'u32[144,128]{1,0:T(1,128)}', space=vmem, size = 0x12000, scoped, tag = 'internal scratch']
  #allocation2 [shape = 'f32[1,1]{1,0:T(1,128)S(1)}', space=vmem, size = 0x200, scoped, tag = 'scoped memory for mydqn_forward.1']
  %s0 = inlined_call_operand.vmem [shape: f32[4,128], index: 0, kind: input, shape index: {}]
  %s1 = inlined_call_operand.vmem [shape: f32[128,4], index: 1, kind: input, shape index: {}]
  %s2 = inlined_call_operand.vmem [shape: f32[128,1], index: 2, kind: input, shape index: {}]
  %s3 = inlined_call_operand.vmem [shape: f32[32,128], index: 3, kind: input, shape index: {}]
  %s4 = inlined_call_operand.vmem [shape: f32[32,1], index: 4, kind: input, shape index: {}]
  %s5 = inlined_call_operand.vmem [shape: f32[8,32], index: 5, kind: input, shape index: {}]
  %s6 = inlined_call_operand.vmem [shape: f32[8,1], index: 6, kind: input, shape index: {}]
  %s7 = inlined_call_operand.vmem [shape: f32[1,8], index: 7, kind: input, shape index: {}]
  %s8 = inlined_call_operand.<no memory space> [shape: f32[1,1], index: 8, kind: input, shape index: {}]
  %s9 = inlined_call_operand.vmem [shape: f32[1,128], index: 9, kind: output, shape index: {}]
  %s10 = sld [smem:[#allocation0]]
  $region46: #{mydqn_forward.1} parent=0
    _
  %s12 = ssub.s32 1, %s10
  %s13 = scalar_select 0, %s12, %s10
  %v14 = vstv %s8
  %15 = vst [vmem:[#allocation2] sm:$0x1] %v14
  // Predicated region
  $region2: #{mydqn_forward.1} parent=0 // pred_check
    _
  $region3: #{mydqn_forward.1} parent=0 // pred_check_branch
    %17 = sbr.rel (0) target = $region5
  $region4: #{mydqn_forward.1} parent=0 // pred_region
    _
  $region5: #{mydqn_forward.1} parent=0 // pred_fallthru
    _
  // Predicated region
  $region6: #{mydqn_forward.1} parent=0 // pred_check
    _
  $region7: #{mydqn_forward.1} parent=0 // pred_check_branch
    %19 = sbr.rel (0) target = $region9
  $region8: #{mydqn_forward.1} parent=0 // pred_region
    _
  $region9: #{mydqn_forward.1} parent=0 // pred_fallthru
    _
  // Predicated region
  $region10: #{mydqn_forward.1} parent=0 // pred_check
    _
  $region11: #{mydqn_forward.1} parent=0 // pred_check_branch
    %21 = sbr.rel (0) target = $region13
  $region12: #{mydqn_forward.1} parent=0 // pred_region
    _
  $region13: #{mydqn_forward.1} parent=0 // pred_fallthru
    _
  // Predicated region
  $region14: #{mydqn_forward.1} parent=0 // pred_check
    _
  $region15: #{mydqn_forward.1} parent=0 // pred_check_branch
    %23 = sbr.rel (0) target = $region17
  $region16: #{mydqn_forward.1} parent=0 // pred_region
    _
  $region17: #{mydqn_forward.1} parent=0 // pred_fallthru
    _
  // Predicated region
  $region18: #{mydqn_forward.1} parent=0 // pred_check
    _
  $region19: #{mydqn_forward.1} parent=0 // pred_check_branch
    %25 = sbr.rel (0) target = $region21
  $region20: #{mydqn_forward.1} parent=0 // pred_region
    _
  $region21: #{mydqn_forward.1} parent=0 // pred_fallthru
    _
  // Predicated region
  $region22: #{mydqn_forward.1} parent=0 // pred_check
    _
  $region23: #{mydqn_forward.1} parent=0 // pred_check_branch
    %27 = sbr.rel (0) target = $region25
  $region24: #{mydqn_forward.1} parent=0 // pred_region
    _
  $region25: #{mydqn_forward.1} parent=0 // pred_fallthru
    _
  // Predicated region
  $region26: #{mydqn_forward.1} parent=0 // pred_check
    _
  $region27: #{mydqn_forward.1} parent=0 // pred_check_branch
    %29 = sbr.rel (0) target = $region29
  $region28: #{mydqn_forward.1} parent=0 // pred_region
    _
  $region29: #{mydqn_forward.1} parent=0 // pred_fallthru
    _
  // Predicated region
  $region30: #{mydqn_forward.1} parent=0 // pred_check
    _
  $region31: #{mydqn_forward.1} parent=0 // pred_check_branch
    %31 = sbr.rel (0) target = $region33
  $region32: #{mydqn_forward.1} parent=0 // pred_region
    _
  $region33: #{mydqn_forward.1} parent=0 // pred_fallthru
    _
  // Predicated region
  $region34: #{mydqn_forward.1} parent=0 // pred_check
    _
  $region35: #{mydqn_forward.1} parent=0 // pred_check_branch
    %33 = sbr.rel (0) target = $region37
  $region36: #{mydqn_forward.1} parent=0 // pred_region
    _
  $region37: #{mydqn_forward.1} parent=0 // pred_fallthru
    _
  %v34 = vld [vmem:[%s0] sm:$0xf]
  %v35 = vld [vmem:[%s1] sm:$0xff]
  %v36 = vld [vmem:[%s1 + $0x8] sm:$0xff]
  %v37 = vld [vmem:[%s1 + $0x10] sm:$0xff]
  %v38 = vld [vmem:[%s1 + $0x18] sm:$0xff]
  %v39 = vld [vmem:[%s1 + $0x20] sm:$0xff]
  %v40 = vld [vmem:[%s1 + $0x28] sm:$0xff]
  %v41 = vld [vmem:[%s1 + $0x30] sm:$0xff]
  %v42 = vld [vmem:[%s1 + $0x38] sm:$0xff]
  %v43 = vld [vmem:[%s1 + $0x40] sm:$0xff]
  %v44 = vld [vmem:[%s1 + $0x48] sm:$0xff]
  %v45 = vld [vmem:[%s1 + $0x50] sm:$0xff]
  %v46 = vld [vmem:[%s1 + $0x58] sm:$0xff]
  %v47 = vld [vmem:[%s1 + $0x60] sm:$0xff]
  %v48 = vld [vmem:[%s1 + $0x68] sm:$0xff]
  %v49 = vld [vmem:[%s1 + $0x70] sm:$0xff]
  %v50 = vld [vmem:[%s1 + $0x78] sm:$0xff]
  %v51 = vld [vmem:[%s2] sm:$0xff]
  %v52 = vld [vmem:[%s2 + $0x8] sm:$0xff]
  %v53 = vld [vmem:[%s2 + $0x10] sm:$0xff]
  %v54 = vld [vmem:[%s2 + $0x18] sm:$0xff]
  %v55 = vld [vmem:[%s2 + $0x20] sm:$0xff]
  %v56 = vld [vmem:[%s2 + $0x28] sm:$0xff]
  %v57 = vld [vmem:[%s2 + $0x30] sm:$0xff]
  %v58 = vld [vmem:[%s2 + $0x38] sm:$0xff]
  %v59 = vld [vmem:[%s2 + $0x40] sm:$0xff]
  %v60 = vld [vmem:[%s2 + $0x48] sm:$0xff]
  %v61 = vld [vmem:[%s2 + $0x50] sm:$0xff]
  %v62 = vld [vmem:[%s2 + $0x58] sm:$0xff]
  %v63 = vld [vmem:[%s2 + $0x60] sm:$0xff]
  %v64 = vld [vmem:[%s2 + $0x68] sm:$0xff]
  %v65 = vld [vmem:[%s2 + $0x70] sm:$0xff]
  %v66 = vld [vmem:[%s2 + $0x78] sm:$0xff]
  %68 = vset.pattern.permute.xlu0 0
  %69 = vperm.xlu0 %68, %v35
  %v70 = vpop.permute.xlu0 %69
  %73 = vset.pattern.permute.xlu0 0
  %74 = vperm.xlu0 %73, %v36
  %v75 = vpop.permute.xlu0 %74
  %78 = vset.pattern.permute.xlu0 0
  %79 = vperm.xlu0 %78, %v37
  %v80 = vpop.permute.xlu0 %79
  %83 = vset.pattern.permute.xlu0 0
  %84 = vperm.xlu0 %83, %v38
  %v85 = vpop.permute.xlu0 %84
  %88 = vset.pattern.permute.xlu0 0
  %89 = vperm.xlu0 %88, %v39
  %v90 = vpop.permute.xlu0 %89
  %93 = vset.pattern.permute.xlu0 0
  %94 = vperm.xlu0 %93, %v40
  %v95 = vpop.permute.xlu0 %94
  %98 = vset.pattern.permute.xlu0 0
  %99 = vperm.xlu0 %98, %v41
  %v100 = vpop.permute.xlu0 %99
  %103 = vset.pattern.permute.xlu0 0
  %104 = vperm.xlu0 %103, %v42
  %v105 = vpop.permute.xlu0 %104
  %108 = vset.pattern.permute.xlu0 0
  %109 = vperm.xlu0 %108, %v43
  %v110 = vpop.permute.xlu0 %109
  %113 = vset.pattern.permute.xlu0 0
  %114 = vperm.xlu0 %113, %v44
  %v115 = vpop.permute.xlu0 %114
  %118 = vset.pattern.permute.xlu0 0
  %119 = vperm.xlu0 %118, %v45
  %v120 = vpop.permute.xlu0 %119
  %123 = vset.pattern.permute.xlu0 0
  %124 = vperm.xlu0 %123, %v46
  %v125 = vpop.permute.xlu0 %124
  %128 = vset.pattern.permute.xlu0 0
  %129 = vperm.xlu0 %128, %v47
  %v130 = vpop.permute.xlu0 %129
  %133 = vset.pattern.permute.xlu0 0
  %134 = vperm.xlu0 %133, %v48
  %v135 = vpop.permute.xlu0 %134
  %138 = vset.pattern.permute.xlu0 0
  %139 = vperm.xlu0 %138, %v49
  %v140 = vpop.permute.xlu0 %139
  %143 = vset.pattern.permute.xlu0 0
  %144 = vperm.xlu0 %143, %v50
  %v145 = vpop.permute.xlu0 %144
  %v147 = vlaneseq
  %v148 = vshrl.u32 %v147, 7
  %v149 = vsub.s32 0, %v148
  %v150 = vrot.slane %v34, %v149
  %v151 = vmul.f32 %v70, %v150
  %v152 = vmul.f32 %v75, %v150
  %v153 = vmul.f32 %v80, %v150
  %v154 = vmul.f32 %v85, %v150
  %v155 = vmul.f32 %v90, %v150
  %v156 = vmul.f32 %v95, %v150
  %v157 = vmul.f32 %v100, %v150
  %v158 = vmul.f32 %v105, %v150
  %v159 = vmul.f32 %v110, %v150
  %v160 = vmul.f32 %v115, %v150
  %v161 = vmul.f32 %v120, %v150
  %v162 = vmul.f32 %v125, %v150
  %v163 = vmul.f32 %v130, %v150
  %v164 = vmul.f32 %v135, %v150
  %v165 = vmul.f32 %v140, %v150
  %v166 = vmul.f32 %v145, %v150
  %168 = vset.pattern.permute.xlu0 0
  %169 = vperm.xlu0 %168, %v51
  %v170 = vpop.permute.xlu0 %169
  %173 = vset.pattern.permute.xlu0 0
  %174 = vperm.xlu0 %173, %v52
  %v175 = vpop.permute.xlu0 %174
  %178 = vset.pattern.permute.xlu0 0
  %179 = vperm.xlu0 %178, %v53
  %v180 = vpop.permute.xlu0 %179
  %183 = vset.pattern.permute.xlu0 0
  %184 = vperm.xlu0 %183, %v54
  %v185 = vpop.permute.xlu0 %184
  %188 = vset.pattern.permute.xlu0 0
  %189 = vperm.xlu0 %188, %v55
  %v190 = vpop.permute.xlu0 %189
  %193 = vset.pattern.permute.xlu0 0
  %194 = vperm.xlu0 %193, %v56
  %v195 = vpop.permute.xlu0 %194
  %198 = vset.pattern.permute.xlu0 0
  %199 = vperm.xlu0 %198, %v57
  %v200 = vpop.permute.xlu0 %199
  %203 = vset.pattern.permute.xlu0 0
  %204 = vperm.xlu0 %203, %v58
  %v205 = vpop.permute.xlu0 %204
  %208 = vset.pattern.permute.xlu0 0
  %209 = vperm.xlu0 %208, %v59
  %v210 = vpop.permute.xlu0 %209
  %213 = vset.pattern.permute.xlu0 0
  %214 = vperm.xlu0 %213, %v60
  %v215 = vpop.permute.xlu0 %214
  %218 = vset.pattern.permute.xlu0 0
  %219 = vperm.xlu0 %218, %v61
  %v220 = vpop.permute.xlu0 %219
  %223 = vset.pattern.permute.xlu0 0
  %224 = vperm.xlu0 %223, %v62
  %v225 = vpop.permute.xlu0 %224
  %228 = vset.pattern.permute.xlu0 0
  %229 = vperm.xlu0 %228, %v63
  %v230 = vpop.permute.xlu0 %229
  %233 = vset.pattern.permute.xlu0 0
  %234 = vperm.xlu0 %233, %v64
  %v235 = vpop.permute.xlu0 %234
  %238 = vset.pattern.permute.xlu0 0
  %239 = vperm.xlu0 %238, %v65
  %v240 = vpop.permute.xlu0 %239
  %243 = vset.pattern.permute.xlu0 0
  %244 = vperm.xlu0 %243, %v66
  %v245 = vpop.permute.xlu0 %244
  %v247 = vadd.f32 %v170, %v151
  %v248 = vadd.f32 %v175, %v152
  %v249 = vadd.f32 %v180, %v153
  %v250 = vadd.f32 %v185, %v154
  %v251 = vadd.f32 %v190, %v155
  %v252 = vadd.f32 %v195, %v156
  %v253 = vadd.f32 %v200, %v157
  %v254 = vadd.f32 %v205, %v158
  %v255 = vadd.f32 %v210, %v159
  %v256 = vadd.f32 %v215, %v160
  %v257 = vadd.f32 %v220, %v161
  %v258 = vadd.f32 %v225, %v162
  %v259 = vadd.f32 %v230, %v163
  %v260 = vadd.f32 %v235, %v164
  %v261 = vadd.f32 %v240, %v165
  %v262 = vadd.f32 %v245, %v166
  %263 = vset.pattern.permute.xlu0 1
  %264 = vperm.xlu0 %263, %v35
  %v265 = vpop.permute.xlu0 %264
  %267 = vset.pattern.permute.xlu0 1
  %268 = vperm.xlu0 %267, %v36
  %v269 = vpop.permute.xlu0 %268
  %271 = vset.pattern.permute.xlu0 1
  %272 = vperm.xlu0 %271, %v37
  %v273 = vpop.permute.xlu0 %272
  %275 = vset.pattern.permute.xlu0 1
  %276 = vperm.xlu0 %275, %v38
  %v277 = vpop.permute.xlu0 %276
  %279 = vset.pattern.permute.xlu0 1
  %280 = vperm.xlu0 %279, %v39
  %v281 = vpop.permute.xlu0 %280
  %283 = vset.pattern.permute.xlu0 1
  %284 = vperm.xlu0 %283, %v40
  %v285 = vpop.permute.xlu0 %284
  %287 = vset.pattern.permute.xlu0 1
  %288 = vperm.xlu0 %287, %v41
  %v289 = vpop.permute.xlu0 %288
  %291 = vset.pattern.permute.xlu0 1
  %292 = vperm.xlu0 %291, %v42
  %v293 = vpop.permute.xlu0 %292
  %295 = vset.pattern.permute.xlu0 1
  %296 = vperm.xlu0 %295, %v43
  %v297 = vpop.permute.xlu0 %296
  %299 = vset.pattern.permute.xlu0 1
  %300 = vperm.xlu0 %299, %v44
  %v301 = vpop.permute.xlu0 %300
  %303 = vset.pattern.permute.xlu0 1
  %304 = vperm.xlu0 %303, %v45
  %v305 = vpop.permute.xlu0 %304
  %307 = vset.pattern.permute.xlu0 1
  %308 = vperm.xlu0 %307, %v46
  %v309 = vpop.permute.xlu0 %308
  %311 = vset.pattern.permute.xlu0 1
  %312 = vperm.xlu0 %311, %v47
  %v313 = vpop.permute.xlu0 %312
  %315 = vset.pattern.permute.xlu0 1
  %316 = vperm.xlu0 %315, %v48
  %v317 = vpop.permute.xlu0 %316
  %319 = vset.pattern.permute.xlu0 1
  %320 = vperm.xlu0 %319, %v49
  %v321 = vpop.permute.xlu0 %320
  %323 = vset.pattern.permute.xlu0 1
  %324 = vperm.xlu0 %323, %v50
  %v325 = vpop.permute.xlu0 %324
  %v327 = vlaneseq
  %v328 = vshrl.u32 %v327, 7
  %v329 = vsub.s32 1, %v328
  %v330 = vrot.slane %v34, %v329
  %v331 = vmul.f32 %v265, %v330
  %v332 = vmul.f32 %v269, %v330
  %v333 = vmul.f32 %v273, %v330
  %v334 = vmul.f32 %v277, %v330
  %v335 = vmul.f32 %v281, %v330
  %v336 = vmul.f32 %v285, %v330
  %v337 = vmul.f32 %v289, %v330
  %v338 = vmul.f32 %v293, %v330
  %v339 = vmul.f32 %v297, %v330
  %v340 = vmul.f32 %v301, %v330
  %v341 = vmul.f32 %v305, %v330
  %v342 = vmul.f32 %v309, %v330
  %v343 = vmul.f32 %v313, %v330
  %v344 = vmul.f32 %v317, %v330
  %v345 = vmul.f32 %v321, %v330
  %v346 = vmul.f32 %v325, %v330
  %v347 = vadd.f32 %v247, %v331
  %v348 = vadd.f32 %v248, %v332
  %v349 = vadd.f32 %v249, %v333
  %v350 = vadd.f32 %v250, %v334
  %v351 = vadd.f32 %v251, %v335
  %v352 = vadd.f32 %v252, %v336
  %v353 = vadd.f32 %v253, %v337
  %v354 = vadd.f32 %v254, %v338
  %v355 = vadd.f32 %v255, %v339
  %v356 = vadd.f32 %v256, %v340
  %v357 = vadd.f32 %v257, %v341
  %v358 = vadd.f32 %v258, %v342
  %v359 = vadd.f32 %v259, %v343
  %v360 = vadd.f32 %v260, %v344
  %v361 = vadd.f32 %v261, %v345
  %v362 = vadd.f32 %v262, %v346
  %363 = vset.pattern.permute.xlu0 2
  %364 = vperm.xlu0 %363, %v35
  %v365 = vpop.permute.xlu0 %364
  %367 = vset.pattern.permute.xlu0 2
  %368 = vperm.xlu0 %367, %v36
  %v369 = vpop.permute.xlu0 %368
  %371 = vset.pattern.permute.xlu0 2
  %372 = vperm.xlu0 %371, %v37
  %v373 = vpop.permute.xlu0 %372
  %375 = vset.pattern.permute.xlu0 2
  %376 = vperm.xlu0 %375, %v38
  %v377 = vpop.permute.xlu0 %376
  %379 = vset.pattern.permute.xlu0 2
  %380 = vperm.xlu0 %379, %v39
  %v381 = vpop.permute.xlu0 %380
  %383 = vset.pattern.permute.xlu0 2
  %384 = vperm.xlu0 %383, %v40
  %v385 = vpop.permute.xlu0 %384
  %387 = vset.pattern.permute.xlu0 2
  %388 = vperm.xlu0 %387, %v41
  %v389 = vpop.permute.xlu0 %388
  %391 = vset.pattern.permute.xlu0 2
  %392 = vperm.xlu0 %391, %v42
  %v393 = vpop.permute.xlu0 %392
  %395 = vset.pattern.permute.xlu0 2
  %396 = vperm.xlu0 %395, %v43
  %v397 = vpop.permute.xlu0 %396
  %399 = vset.pattern.permute.xlu0 2
  %400 = vperm.xlu0 %399, %v44
  %v401 = vpop.permute.xlu0 %400
  %403 = vset.pattern.permute.xlu0 2
  %404 = vperm.xlu0 %403, %v45
  %v405 = vpop.permute.xlu0 %404
  %407 = vset.pattern.permute.xlu0 2
  %408 = vperm.xlu0 %407, %v46
  %v409 = vpop.permute.xlu0 %408
  %411 = vset.pattern.permute.xlu0 2
  %412 = vperm.xlu0 %411, %v47
  %v413 = vpop.permute.xlu0 %412
  %415 = vset.pattern.permute.xlu0 2
  %416 = vperm.xlu0 %415, %v48
  %v417 = vpop.permute.xlu0 %416
  %419 = vset.pattern.permute.xlu0 2
  %420 = vperm.xlu0 %419, %v49
  %v421 = vpop.permute.xlu0 %420
  %423 = vset.pattern.permute.xlu0 2
  %424 = vperm.xlu0 %423, %v50
  %v425 = vpop.permute.xlu0 %424
  %v427 = vlaneseq
  %v428 = vshrl.u32 %v427, 7
  %v429 = vsub.s32 2, %v428
  %v430 = vrot.slane %v34, %v429
  %v431 = vmul.f32 %v365, %v430
  %v432 = vmul.f32 %v369, %v430
  %v433 = vmul.f32 %v373, %v430
  %v434 = vmul.f32 %v377, %v430
  %v435 = vmul.f32 %v381, %v430
  %v436 = vmul.f32 %v385, %v430
  %v437 = vmul.f32 %v389, %v430
  %v438 = vmul.f32 %v393, %v430
  %v439 = vmul.f32 %v397, %v430
  %v440 = vmul.f32 %v401, %v430
  %v441 = vmul.f32 %v405, %v430
  %v442 = vmul.f32 %v409, %v430
  %v443 = vmul.f32 %v413, %v430
  %v444 = vmul.f32 %v417, %v430
  %v445 = vmul.f32 %v421, %v430
  %v446 = vmul.f32 %v425, %v430
  %v447 = vadd.f32 %v347, %v431
  %v448 = vadd.f32 %v348, %v432
  %v449 = vadd.f32 %v349, %v433
  %v450 = vadd.f32 %v350, %v434
  %v451 = vadd.f32 %v351, %v435
  %v452 = vadd.f32 %v352, %v436
  %v453 = vadd.f32 %v353, %v437
  %v454 = vadd.f32 %v354, %v438
  %v455 = vadd.f32 %v355, %v439
  %v456 = vadd.f32 %v356, %v440
  %v457 = vadd.f32 %v357, %v441
  %v458 = vadd.f32 %v358, %v442
  %v459 = vadd.f32 %v359, %v443
  %v460 = vadd.f32 %v360, %v444
  %v461 = vadd.f32 %v361, %v445
  %v462 = vadd.f32 %v362, %v446
  %463 = vset.pattern.permute.xlu0 3
  %464 = vperm.xlu0 %463, %v35
  %v465 = vpop.permute.xlu0 %464
  %467 = vset.pattern.permute.xlu0 3
  %468 = vperm.xlu0 %467, %v36
  %v469 = vpop.permute.xlu0 %468
  %471 = vset.pattern.permute.xlu0 3
  %472 = vperm.xlu0 %471, %v37
  %v473 = vpop.permute.xlu0 %472
  %475 = vset.pattern.permute.xlu0 3
  %476 = vperm.xlu0 %475, %v38
  %v477 = vpop.permute.xlu0 %476
  %479 = vset.pattern.permute.xlu0 3
  %480 = vperm.xlu0 %479, %v39
  %v481 = vpop.permute.xlu0 %480
  %483 = vset.pattern.permute.xlu0 3
  %484 = vperm.xlu0 %483, %v40
  %v485 = vpop.permute.xlu0 %484
  %487 = vset.pattern.permute.xlu0 3
  %488 = vperm.xlu0 %487, %v41
  %v489 = vpop.permute.xlu0 %488
  %491 = vset.pattern.permute.xlu0 3
  %492 = vperm.xlu0 %491, %v42
  %v493 = vpop.permute.xlu0 %492
  %495 = vset.pattern.permute.xlu0 3
  %496 = vperm.xlu0 %495, %v43
  %v497 = vpop.permute.xlu0 %496
  %499 = vset.pattern.permute.xlu0 3
  %500 = vperm.xlu0 %499, %v44
  %v501 = vpop.permute.xlu0 %500
  %503 = vset.pattern.permute.xlu0 3
  %504 = vperm.xlu0 %503, %v45
  %v505 = vpop.permute.xlu0 %504
  %507 = vset.pattern.permute.xlu0 3
  %508 = vperm.xlu0 %507, %v46
  %v509 = vpop.permute.xlu0 %508
  %511 = vset.pattern.permute.xlu0 3
  %512 = vperm.xlu0 %511, %v47
  %v513 = vpop.permute.xlu0 %512
  %515 = vset.pattern.permute.xlu0 3
  %516 = vperm.xlu0 %515, %v48
  %v517 = vpop.permute.xlu0 %516
  %519 = vset.pattern.permute.xlu0 3
  %520 = vperm.xlu0 %519, %v49
  %v521 = vpop.permute.xlu0 %520
  %523 = vset.pattern.permute.xlu0 3
  %524 = vperm.xlu0 %523, %v50
  %v525 = vpop.permute.xlu0 %524
  %v527 = vlaneseq
  %v528 = vshrl.u32 %v527, 7
  %v529 = vsub.s32 3, %v528
  %v530 = vrot.slane %v34, %v529
  %v531 = vmul.f32 %v465, %v530
  %v532 = vmul.f32 %v469, %v530
  %v533 = vmul.f32 %v473, %v530
  %v534 = vmul.f32 %v477, %v530
  %v535 = vmul.f32 %v481, %v530
  %v536 = vmul.f32 %v485, %v530
  %v537 = vmul.f32 %v489, %v530
  %v538 = vmul.f32 %v493, %v530
  %v539 = vmul.f32 %v497, %v530
  %v540 = vmul.f32 %v501, %v530
  %v541 = vmul.f32 %v505, %v530
  %v542 = vmul.f32 %v509, %v530
  %v543 = vmul.f32 %v513, %v530
  %v544 = vmul.f32 %v517, %v530
  %v545 = vmul.f32 %v521, %v530
  %v546 = vmul.f32 %v525, %v530
  %v547 = vadd.f32 %v447, %v531
  %v548 = vadd.f32 %v448, %v532
  %v549 = vadd.f32 %v449, %v533
  %v550 = vadd.f32 %v450, %v534
  %v551 = vadd.f32 %v451, %v535
  %v552 = vadd.f32 %v452, %v536
  %v553 = vadd.f32 %v453, %v537
  %v554 = vadd.f32 %v454, %v538
  %v555 = vadd.f32 %v455, %v539
  %v556 = vadd.f32 %v456, %v540
  %v557 = vadd.f32 %v457, %v541
  %v558 = vadd.f32 %v458, %v542
  %v559 = vadd.f32 %v459, %v543
  %v560 = vadd.f32 %v460, %v544
  %v561 = vadd.f32 %v461, %v545
  %v562 = vadd.f32 %v462, %v546
  %v563 = vmax.f32 %v547, 0.0
  %v564 = vmax.f32 %v548, 0.0
  %v565 = vmax.f32 %v549, 0.0
  %v566 = vmax.f32 %v550, 0.0
  %v567 = vmax.f32 %v551, 0.0
  %v568 = vmax.f32 %v552, 0.0
  %v569 = vmax.f32 %v553, 0.0
  %v570 = vmax.f32 %v554, 0.0
  %v571 = vmax.f32 %v555, 0.0
  %v572 = vmax.f32 %v556, 0.0
  %v573 = vmax.f32 %v557, 0.0
  %v574 = vmax.f32 %v558, 0.0
  %v575 = vmax.f32 %v559, 0.0
  %v576 = vmax.f32 %v560, 0.0
  %v577 = vmax.f32 %v561, 0.0
  %v578 = vmax.f32 %v562, 0.0
  %v579 = vld [vmem:[%s3] sm:$0xff]
  %v580 = vld [vmem:[%s3 + $0x8] sm:$0xff]
  %v581 = vld [vmem:[%s3 + $0x10] sm:$0xff]
  %v582 = vld [vmem:[%s3 + $0x18] sm:$0xff]
  %v583 = vld [vmem:[%s4] sm:$0xff]
  %v584 = vld [vmem:[%s4 + $0x8] sm:$0xff]
  %v585 = vld [vmem:[%s4 + $0x10] sm:$0xff]
  %v586 = vld [vmem:[%s4 + $0x18] sm:$0xff]
  %588 = vset.pattern.permute.xlu0 0
  %589 = vperm.xlu0 %588, %v583
  %v590 = vpop.permute.xlu0 %589
  %593 = vset.pattern.permute.xlu0 0
  %594 = vperm.xlu0 %593, %v584
  %v595 = vpop.permute.xlu0 %594
  %598 = vset.pattern.permute.xlu0 0
  %599 = vperm.xlu0 %598, %v585
  %v600 = vpop.permute.xlu0 %599
  %603 = vset.pattern.permute.xlu0 0
  %604 = vperm.xlu0 %603, %v586
  %v605 = vpop.permute.xlu0 %604
  %607 = vmatprep.subr.mxu0 0.0
  %608 = vmatpush1.msra.mxu0 %v563
  %609 = vmatprep.subr.mxu0 0.0
  %610 = vmatpush1.msra.mxu0 %v564
  %611 = vmatprep.subr.mxu0 0.0
  %612 = vmatpush1.msra.mxu0 %v565
  %613 = vmatprep.subr.mxu0 0.0
  %614 = vmatpush1.msra.mxu0 %v566
  %615 = vmatprep.subr.mxu0 0.0
  %616 = vmatpush1.msra.mxu0 %v567
  %617 = vmatprep.subr.mxu0 0.0
  %618 = vmatpush1.msra.mxu0 %v568
  %619 = vmatprep.subr.mxu0 0.0
  %620 = vmatpush1.msra.mxu0 %v569
  %621 = vmatprep.subr.mxu0 0.0
  %622 = vmatpush1.msra.mxu0 %v570
  %623 = vmatprep.subr.mxu0 0.0
  %624 = vmatpush1.msra.mxu0 %v571
  %625 = vmatprep.subr.mxu0 0.0
  %626 = vmatpush1.msra.mxu0 %v572
  %627 = vmatprep.subr.mxu0 0.0
  %628 = vmatpush1.msra.mxu0 %v573
  %629 = vmatprep.subr.mxu0 0.0
  %630 = vmatpush1.msra.mxu0 %v574
  %631 = vmatprep.subr.mxu0 0.0
  %632 = vmatpush1.msra.mxu0 %v575
  %633 = vmatprep.subr.mxu0 0.0
  %634 = vmatpush1.msra.mxu0 %v576
  %635 = vmatprep.subr.mxu0 0.0
  %636 = vmatpush1.msra.mxu0 %v577
  %637 = vmatprep.subr.mxu0 0.0
  %638 = vmatpush1.msra.mxu0 %v578
  %639 = vmatprep.subr.mxu0 0.0
  %640 = vmatpush1.msra.mxu0 0.0
  %641 = vmatprep.subr.mxu0 0.0
  %642 = vmatpush1.msra.mxu0 0.0
  %643 = vmatprep.subr.mxu0 0.0
  %644 = vmatpush1.msra.mxu0 0.0
  %645 = vmatprep.subr.mxu0 0.0
  %646 = vmatpush1.msra.mxu0 0.0
  %647 = vmatprep.subr.mxu0 0.0
  %648 = vmatpush1.msra.mxu0 0.0
  %649 = vmatprep.subr.mxu0 0.0
  %650 = vmatpush1.msra.mxu0 0.0
  %651 = vmatprep.subr.mxu0 0.0
  %652 = vmatpush1.msra.mxu0 0.0
  %653 = vmatprep.subr.mxu0 0.0
  %654 = vmatpush1.msra.mxu0 0.0
  %655 = vmatprep.subr.mxu0 0.0
  %656 = vmatpush1.msra.mxu0 0.0
  %657 = vmatprep.subr.mxu0 0.0
  %658 = vmatpush1.msra.mxu0 0.0
  %659 = vmatprep.subr.mxu0 0.0
  %660 = vmatpush1.msra.mxu0 0.0
  %661 = vmatprep.subr.mxu0 0.0
  %662 = vmatpush1.msra.mxu0 0.0
  %663 = vmatprep.subr.mxu0 0.0
  %664 = vmatpush1.msra.mxu0 0.0
  %665 = vmatprep.subr.mxu0 0.0
  %666 = vmatpush1.msra.mxu0 0.0
  %667 = vmatprep.subr.mxu0 0.0
  %668 = vmatpush1.msra.mxu0 0.0
  %669 = vmatprep.subr.mxu0 0.0
  %670 = vmatpush1.msra.mxu0 0.0
  %671 = vmatprep.mubr.f32.mxu0 0.0
  %672 = vmatmul.mubr.f32.gmra.mrb[0].mxu0 %v579
  %v673 = vpop.f32.mrb[0].mxu0
  %v674 = vadd.f32 %v590, %v673
  %v675 = vpop.f32.mrb[0].mxu0
  %676 = vmatprep.mubr.f32.mxu0 0.0
  %677 = vmatmul.mubr.f32.gmra.mrb[0].mxu0 %v580
  %v678 = vpop.f32.mrb[0].mxu0
  %v679 = vadd.f32 %v595, %v678
  %v680 = vpop.f32.mrb[0].mxu0
  %681 = vmatprep.mubr.f32.mxu0 0.0
  %682 = vmatmul.mubr.f32.gmra.mrb[0].mxu0 %v581
  %v683 = vpop.f32.mrb[0].mxu0
  %v684 = vadd.f32 %v600, %v683
  %v685 = vpop.f32.mrb[0].mxu0
  %686 = vmatprep.mubr.f32.mxu0 0.0
  %687 = vmatmul.mubr.f32.gmra.mrb[0].mxu0 %v582
  %v688 = vpop.f32.mrb[0].mxu0
  %v689 = vadd.f32 %v605, %v688
  %v690 = vpop.f32.mrb[0].mxu0
  %691 = vdwg.mxu0
  %v692 = vmax.f32 %v674, 0.0
  %v693 = vmax.f32 %v679, 0.0
  %v694 = vmax.f32 %v684, 0.0
  %v695 = vmax.f32 %v689, 0.0
  %v696 = vld [vmem:[%s5] sm:$0xff]
  %v697 = vld [vmem:[%s6] sm:$0xff]
  %699 = vset.pattern.permute.xlu0 0
  %700 = vperm.xlu0 %699, %v697
  %v701 = vpop.permute.xlu0 %700
  %vm703 = vcmask 261120
  %v705 = vsel %vm703, %v696, 0
  %707 = vmatprep.subr.mxu0 0.0
  %708 = vmatpush1.msra.mxu0 %v692
  %709 = vmatprep.subr.mxu0 0.0
  %710 = vmatpush1.msra.mxu0 %v693
  %711 = vmatprep.subr.mxu0 0.0
  %712 = vmatpush1.msra.mxu0 %v694
  %713 = vmatprep.subr.mxu0 0.0
  %714 = vmatpush1.msra.mxu0 %v695
  %715 = vmatprep.subr.mxu0 0.0
  %716 = vmatpush1.msra.mxu0 0.0
  %717 = vmatprep.subr.mxu0 0.0
  %718 = vmatpush1.msra.mxu0 0.0
  %719 = vmatprep.subr.mxu0 0.0
  %720 = vmatpush1.msra.mxu0 0.0
  %721 = vmatprep.subr.mxu0 0.0
  %722 = vmatpush1.msra.mxu0 0.0
  %723 = vmatprep.subr.mxu0 0.0
  %724 = vmatpush1.msra.mxu0 0.0
  %725 = vmatprep.subr.mxu0 0.0
  %726 = vmatpush1.msra.mxu0 0.0
  %727 = vmatprep.subr.mxu0 0.0
  %728 = vmatpush1.msra.mxu0 0.0
  %729 = vmatprep.subr.mxu0 0.0
  %730 = vmatpush1.msra.mxu0 0.0
  %731 = vmatprep.subr.mxu0 0.0
  %732 = vmatpush1.msra.mxu0 0.0
  %733 = vmatprep.subr.mxu0 0.0
  %734 = vmatpush1.msra.mxu0 0.0
  %735 = vmatprep.subr.mxu0 0.0
  %736 = vmatpush1.msra.mxu0 0.0
  %737 = vmatprep.subr.mxu0 0.0
  %738 = vmatpush1.msra.mxu0 0.0
  %739 = vmatprep.subr.mxu0 0.0
  %740 = vmatpush1.msra.mxu0 0.0
  %741 = vmatprep.subr.mxu0 0.0
  %742 = vmatpush1.msra.mxu0 0.0
  %743 = vmatprep.subr.mxu0 0.0
  %744 = vmatpush1.msra.mxu0 0.0
  %745 = vmatprep.subr.mxu0 0.0
  %746 = vmatpush1.msra.mxu0 0.0
  %747 = vmatprep.subr.mxu0 0.0
  %748 = vmatpush1.msra.mxu0 0.0
  %749 = vmatprep.subr.mxu0 0.0
  %750 = vmatpush1.msra.mxu0 0.0
  %751 = vmatprep.subr.mxu0 0.0
  %752 = vmatpush1.msra.mxu0 0.0
  %753 = vmatprep.subr.mxu0 0.0
  %754 = vmatpush1.msra.mxu0 0.0
  %755 = vmatprep.subr.mxu0 0.0
  %756 = vmatpush1.msra.mxu0 0.0
  %757 = vmatprep.subr.mxu0 0.0
  %758 = vmatpush1.msra.mxu0 0.0
  %759 = vmatprep.subr.mxu0 0.0
  %760 = vmatpush1.msra.mxu0 0.0
  %761 = vmatprep.subr.mxu0 0.0
  %762 = vmatpush1.msra.mxu0 0.0
  %763 = vmatprep.subr.mxu0 0.0
  %764 = vmatpush1.msra.mxu0 0.0
  %765 = vmatprep.subr.mxu0 0.0
  %766 = vmatpush1.msra.mxu0 0.0
  %767 = vmatprep.subr.mxu0 0.0
  %768 = vmatpush1.msra.mxu0 0.0
  %769 = vmatprep.subr.mxu0 0.0
  %770 = vmatpush1.msra.mxu0 0.0
  %771 = vmatprep.mubr.f32.mxu0 0.0
  %772 = vmatmul.mubr.f32.gmra.mrb[0].mxu0 %v705
  %v773 = vpop.f32.mrb[0].mxu0
  %v774 = vadd.f32 %v701, %v773
  %v775 = vpop.f32.mrb[0].mxu0
  %776 = vdwg.mxu0
  %v777 = vmax.f32 %v774, 0.0
  %v778 = vld [vmem:[%s7] sm:$0x1]
  %v779 = vld [vmem:[#allocation2] sm:$0x1]
  %781 = vset.pattern.permute.xlu0 0
  %782 = vperm.xlu0 %781, %v778
  %v783 = vpop.permute.xlu0 %782
  %v785 = vlaneseq
  %v786 = vshrl.u32 %v785, 7
  %v787 = vsub.s32 0, %v786
  %v788 = vrot.slane %v783, %v787
  %v789 = vmul.f32 %v788, %v777
  %791 = vset.pattern.permute.xlu0 0
  %792 = vperm.xlu0 %791, %v779
  %v793 = vpop.permute.xlu0 %792
  %v795 = vlaneseq
  %v796 = vshrl.u32 %v795, 7
  %v797 = vsub.s32 0, %v796
  %v798 = vrot.slane %v793, %v797
  %v799 = vadd.f32 %v798, %v789
  %800 = vset.pattern.permute.xlu0 1
  %801 = vperm.xlu0 %800, %v778
  %v802 = vpop.permute.xlu0 %801
  %v804 = vlaneseq
  %v805 = vshrl.u32 %v804, 7
  %v806 = vsub.s32 0, %v805
  %v807 = vrot.slane %v802, %v806
  %v808 = vmul.f32 %v807, %v777
  %v810 = vrot.slane %v808, 1
  %v812 = vadd.f32 %v799, %v810
  %813 = vset.pattern.permute.xlu0 2
  %814 = vperm.xlu0 %813, %v778
  %v815 = vpop.permute.xlu0 %814
  %v817 = vlaneseq
  %v818 = vshrl.u32 %v817, 7
  %v819 = vsub.s32 0, %v818
  %v820 = vrot.slane %v815, %v819
  %v821 = vmul.f32 %v820, %v777
  %v823 = vrot.slane %v821, 2
  %v825 = vadd.f32 %v812, %v823
  %826 = vset.pattern.permute.xlu0 3
  %827 = vperm.xlu0 %826, %v778
  %v828 = vpop.permute.xlu0 %827
  %v830 = vlaneseq
  %v831 = vshrl.u32 %v830, 7
  %v832 = vsub.s32 0, %v831
  %v833 = vrot.slane %v828, %v832
  %v834 = vmul.f32 %v833, %v777
  %v836 = vrot.slane %v834, 3
  %v838 = vadd.f32 %v825, %v836
  %839 = vset.pattern.permute.xlu0 4
  %840 = vperm.xlu0 %839, %v778
  %v841 = vpop.permute.xlu0 %840
  %v843 = vlaneseq
  %v844 = vshrl.u32 %v843, 7
  %v845 = vsub.s32 0, %v844
  %v846 = vrot.slane %v841, %v845
  %v847 = vmul.f32 %v846, %v777
  %v849 = vrot.slane %v847, 4
  %v851 = vadd.f32 %v838, %v849
  %852 = vset.pattern.permute.xlu0 5
  %853 = vperm.xlu0 %852, %v778
  %v854 = vpop.permute.xlu0 %853
  %v856 = vlaneseq
  %v857 = vshrl.u32 %v856, 7
  %v858 = vsub.s32 0, %v857
  %v859 = vrot.slane %v854, %v858
  %v860 = vmul.f32 %v859, %v777
  %v862 = vrot.slane %v860, 5
  %v864 = vadd.f32 %v851, %v862
  %865 = vset.pattern.permute.xlu0 6
  %866 = vperm.xlu0 %865, %v778
  %v867 = vpop.permute.xlu0 %866
  %v869 = vlaneseq
  %v870 = vshrl.u32 %v869, 7
  %v871 = vsub.s32 0, %v870
  %v872 = vrot.slane %v867, %v871
  %v873 = vmul.f32 %v872, %v777
  %v875 = vrot.slane %v873, 6
  %v877 = vadd.f32 %v864, %v875
  %878 = vset.pattern.permute.xlu0 7
  %879 = vperm.xlu0 %878, %v778
  %v880 = vpop.permute.xlu0 %879
  %v882 = vlaneseq
  %v883 = vshrl.u32 %v882, 7
  %v884 = vsub.s32 0, %v883
  %v885 = vrot.slane %v880, %v884
  %v886 = vmul.f32 %v885, %v777
  %v888 = vrot.slane %v886, 7
  %v890 = vadd.f32 %v877, %v888
  %891 = vst [vmem:[%s9] sm:$0x1] %v890
  // Predicated region
  $region38: #{mydqn_forward.1} parent=0 // pred_check
    _
  $region39: #{mydqn_forward.1} parent=0 // pred_check_branch
    %893 = sbr.rel (0) target = $region41
  $region40: #{mydqn_forward.1} parent=0 // pred_region
    _
  $region41: #{mydqn_forward.1} parent=0 // pred_fallthru
    _
  // Predicated region
  $region42: #{mydqn_forward.1} parent=0 // pred_check
    _
  $region43: #{mydqn_forward.1} parent=0 // pred_check_branch
    %895 = sbr.rel (0) target = $region45
  $region44: #{mydqn_forward.1} parent=0 // pred_region
    _
  $region45: #{mydqn_forward.1} parent=0 // pred_fallthru
    _

</llo_original>
